<compile_context>
chip_gen: v5e
topology: v5e:2x2
jax: 0.10.0
libtpu: 0.0.40
codegen_flags: <defaults>
</compile_context>

<pallas_src>
import math

import jax
import jax.numpy as jnp
from jax.experimental import pallas as pl
from jax.experimental.pallas import tpu as pltpu


_INV_SQRT2 = 1.0 / math.sqrt(2.0)
_LANE_CANDIDATES = (2048, 1024, 512, 256, 128)


def _gelu_kernel(x_ref, o_ref):
    # Compute in f32 regardless of storage dtype (no-op for f32 inputs);
    # matches the fp32 torch reference numerics.
    x = x_ref[...].astype(jnp.float32)
    y = x * 0.5 * (1.0 + jax.lax.erf(x * _INV_SQRT2))
    o_ref[...] = y.astype(o_ref.dtype)


def _gelu_jnp(x):
    """Plain-JAX exact GELU (used for tiny tensors / ragged tails / reference)."""
    xf = x.astype(jnp.float32)
    return (xf * 0.5 * (1.0 + jax.lax.erf(xf * _INV_SQRT2))).astype(x.dtype)


def _sublane_multiple(dtype):
    # Packed-sublane minimum: 8 for 32-bit, 16 for 16-bit, 32 for 8-bit dtypes.
    return max(8, 32 // jnp.dtype(dtype).itemsize)


def _pick_lane(n):
    """Widest lane width dividing n, preferring one that leaves >=8 rows."""
    best = None
    for w in _LANE_CANDIDATES:
        if n % w == 0:
            if best is None:
                best = w
            if n // w >= 8:
                return w
    return best


def _gelu_2d(x2d, *, target_block_bytes, donate):
    """Run the kernel over a (rows, lane) slab. lane is a multiple of 128
    (or the whole slab is a single full-extent block)."""
    rows, lane = x2d.shape
    dtype = x2d.dtype
    itemsize = jnp.dtype(dtype).itemsize
    sub = _sublane_multiple(dtype)

    # Block rows sized for ~target_block_bytes, rounded to the sublane multiple.
    tr_target = max(sub, (target_block_bytes // (lane * itemsize)) // sub * sub)

    if rows >= 2 * sub:
        # Guarantee >=2 grid blocks so "parallel" can shard across v7x's
        # two TensorCores: cap at ceil(rows/2) rounded up to the sublane
        # multiple (still < rows whenever rows >= 2*sub).
        half = -(-rows // 2)
        half = -(-half // sub) * sub
        tr = min(tr_target, half)
    else:
        # Tiny slab: single full-extent block (exempt from the (sub,128) rule).
        tr = rows

    grid = (pl.cdiv(rows, tr),)  # partial last block handled by Pallas masking
    n = rows * lane
    cost = pl.CostEstimate(
        flops=8 * n,               # erf polynomial + mul/add, rough
        transcendentals=n,
        bytes_accessed=2 * n * itemsize,
    )
    extra = {"input_output_aliases": {0: 0}} if donate else {}

    return pl.pallas_call(
        _gelu_kernel,
        out_shape=jax.ShapeDtypeStruct((rows, lane), dtype),
        grid_spec=pltpu.PrefetchScalarGridSpec(
            num_scalar_prefetch=0,
            grid=grid,
            in_specs=[pl.BlockSpec((tr, lane), lambda i: (i, 0))],
            out_specs=pl.BlockSpec((tr, lane), lambda i: (i, 0)),
        ),
        compiler_params=pltpu.CompilerParams(
            dimension_semantics=("parallel",),
            # in+out double buffered = 4 * block_bytes <= 16 MiB; 48 MiB limit
            # is legal on v5e/v6e (128 MiB physical) and under v7x's 64 MiB.
            vmem_limit_bytes=48 << 20,
        ),
        cost_estimate=cost,
        **extra,
    )(x2d)


def gelu_pallas(x, *, target_block_bytes=4 << 20, donate=False):
    """Exact GELU via a Pallas TPU kernel. Accepts any shape / float dtype."""
    orig_shape = x.shape
    total = x.size
    if total == 0:
        return x
    if total < 128:
        # Below one lane of data: not worth a custom call.
        return _gelu_jnp(x)

    lane = _pick_lane(total)
    if lane is not None:
        # Fast path (common case): no pad, no slice — exactly 1 HBM read + 1 write.
        x2d = jnp.reshape(x, (total // lane, lane))
        out = _gelu_2d(x2d, target_block_bytes=target_block_bytes, donate=donate)
        return out.reshape(orig_shape)

    # Ragged path: kernel on the 128-aligned prefix, plain jnp on the <128 tail.
    x_flat = jnp.ravel(x)
    prefix = (total // 128) * 128
    plane = _pick_lane(prefix)
    head = _gelu_2d(
        x_flat[:prefix].reshape(prefix // plane, plane),
        target_block_bytes=target_block_bytes,
        donate=False,
    )
    tail = _gelu_jnp(x_flat[prefix:])
    return jnp.concatenate([head.reshape(prefix), tail]).reshape(orig_shape)


if __name__ == "__main__":
    key = jax.random.PRNGKey(0)
    k0, k1 = jax.random.split(key)

    # Small NCHW input consistent with how Gelu is used inside the attention
    # stack (elementwise activation on feature maps). 2048 elements -> fast
    # (no-pad) path, lane=256, rows=8.
    x = jax.random.normal(k0, (2, 4, 16, 16), dtype=jnp.float32)
    y = jax.block_until_ready(gelu_pallas(x))
    y_ref = _gelu_jnp(x)
    assert y.shape == x.shape and y.dtype == x.dtype
    assert jnp.allclose(y, y_ref, atol=1e-6, rtol=1e-6)

    # Ragged element count (231) -> aligned-prefix kernel + jnp tail path.
    xr = jax.random.normal(k1, (3, 7, 11), dtype=jnp.float32)
    yr = jax.block_until_ready(gelu_pallas(xr))
    yr_ref = _gelu_jnp(xr)
    assert yr.shape == xr.shape and yr.dtype == xr.dtype
    assert jnp.allclose(yr, yr_ref, atol=1e-6, rtol=1e-6)

    print("KERNEL_OK")
</pallas_src>

<mosaic_0001>
module attributes {stable_mosaic.version = 11 : i64} {
  func.func @_gelu_kernel(%arg0: i32, %arg1: memref<8x256xf32, #tpu.memory_space<vmem>>, %arg2: memref<8x256xf32, #tpu.memory_space<vmem>>) attributes {dimension_semantics = [#tpu.dimension_semantics<parallel>], iteration_bounds = array<i64: 1>, scalar_prefetch = 0 : i64, scratch_operands = 0 : i64, tpu.core_type = #tpu.core_type<tc>, window_params = [{transform_indices = @transform_0, window_bounds = array<i64: 8, 256>}, {transform_indices = @transform_1, window_bounds = array<i64: 8, 256>}]} {
    %c0 = arith.constant 0 : index
    %c0_0 = arith.constant 0 : index
    %0 = vector.load %arg1[%c0, %c0_0] : memref<8x256xf32, #tpu.memory_space<vmem>>, vector<8x256xf32>
    %cst = arith.constant 5.000000e-01 : f32
    %1 = vector.broadcast %cst : f32 to vector<8x256xf32>
    %2 = arith.mulf %0, %1 : vector<8x256xf32>
    %cst_1 = arith.constant 0.707106769 : f32
    %3 = vector.broadcast %cst_1 : f32 to vector<8x256xf32>
    %4 = arith.mulf %0, %3 : vector<8x256xf32>
    %5 = math.erf %4 : vector<8x256xf32>
    %cst_2 = arith.constant 1.000000e+00 : f32
    %6 = vector.broadcast %cst_2 : f32 to vector<8x256xf32>
    %7 = arith.addf %6, %5 : vector<8x256xf32>
    %8 = arith.mulf %2, %7 : vector<8x256xf32>
    %c0_3 = arith.constant 0 : index
    %c0_4 = arith.constant 0 : index
    %9 = vector.load %arg2[%c0_3, %c0_4] : memref<8x256xf32, #tpu.memory_space<vmem>>, vector<8x256xf32>
    tpu.vector_store %arg2[%c0_3, %c0_4], %8 {strides = array<i32>} : memref<8x256xf32, #tpu.memory_space<vmem>>, vector<8x256xf32>,
    return
  }
  func.func @transform_0(%arg0: i32) -> (i32, i32) {
    %c0_i32 = arith.constant 0 : i32
    %c0_i32_0 = arith.constant 0 : i32
    return %arg0, %c0_i32 : i32, i32
  }
  func.func @transform_1(%arg0: i32) -> (i32, i32) {
    %c0_i32 = arith.constant 0 : i32
    %c0_i32_0 = arith.constant 0 : i32
    return %arg0, %c0_i32 : i32, i32
  }
}

</mosaic_0001>

<llo_original>
// kernel: tpu_custom_call.1
$region0: #{tpu_custom_call.1}
  #allocation0 [shape = 'u32[]', space=smem, size = 0x4, offset = 0x4, fixed_abs, tag = 'smem constant byte address 0x4 - core index']
  #allocation1 [shape = 'u32[72,128]{1,0:T(1,128)}', space=vmem, size = 0x9000, scoped, tag = 'internal scratch']
  %s0 = inlined_call_operand.hbm [shape: f32[8,256], index: 0, kind: input, shape index: {}]
  %s1 = inlined_call_operand.hbm [shape: f32[8,256], index: 1, kind: output, shape index: {}]
  %s2 = sld [smem:[#allocation0]]
  $region18: #{tpu_custom_call.1} parent=0
    _
  %s4 = ssub.s32 1, %s2
  %s5 = scalar_select 0, %s4, %s2
  $region1: #{tpu_custom_call.1} parent=0
    #allocation2 [shape = 'u8[8192]{0}', space=vmem, size = 0x2000, scoped, tag = 'input window, operand 0, single buffered']
    #allocation3 [shape = 's32[1]{0}', space=sflag, size = 0x4, scoped, tag = 'scoped memory for tpu_custom_call.1']
    #allocation4 [shape = 's32[1]{0}', space=sflag, size = 0x4, scoped, tag = 'scoped memory for tpu_custom_call.1']
    #allocation5 [shape = 'u8[8192]{0}', space=vmem, size = 0x2000, scoped, tag = 'output window, operand 0, single buffered']
    %6 = vsyncpa [#allocation3], 0
    %7 = vsyncpa [#allocation4], 0
    // Predicated region
    $region2: #{tpu_custom_call.1} parent=1 // pred_check
      _
    $region3: #{tpu_custom_call.1} parent=1 // pred_check_branch
      %9 = sbr.rel (0) target = $region5
    $region4: #{tpu_custom_call.1} parent=1 // pred_region
      %11 = vsyncadd [#allocation3], 0
      %s13 = sshll.u32 %s0, 4
      %s14 = int_to_ptr.hbm [resolvable:$true] %s13
      %s15 = sshll.u32 [#allocation2], 4
      %s16 = int_to_ptr.vmem [resolvable:$true] %s15
      %18 = dma.hbm_to_vmem [thread:$0]  %s14, 256, %s16, [#allocation3]
    $region5: #{tpu_custom_call.1} parent=1 // pred_fallthru
      _
    // Predicated region
    $region6: #{tpu_custom_call.1} parent=1 // pred_check
      _
    $region7: #{tpu_custom_call.1} parent=1 // pred_check_branch
      %20 = sbr.rel (0) target = $region9
    $region8: #{tpu_custom_call.1} parent=1 // pred_region
      %22 = dma.done [#allocation3], 256
    $region9: #{tpu_custom_call.1} parent=1 // pred_fallthru
      _
    %v23 = vld [vmem:[#allocation2] sm:$0xff]
    %v24 = vld [vmem:[#allocation2 + $0x8] sm:$0xff]
    %v25 = vmul.f32 %v23, 0.5
    %v26 = vmul.f32 %v24, 0.5
    %v27 = vmul.f32 %v23, 0.70710677
    %v28 = vmul.f32 %v24, 0.70710677
    %v29 = vmul.f32 %v27, %v27
    %v30 = vmin.f32 16.0, %v29
    %v31 = vmul.f32 %v30, 2.1237322e-06
    %v32 = vadd.f32 %v31, 0.00028619796
    %v33 = vmul.f32 %v30, %v32
    %v34 = vadd.f32 %v33, 0.0036580483
    %v35 = vmul.f32 %v30, %v34
    %v36 = vadd.f32 %v35, 0.05243302
    %v37 = vmul.f32 %v30, %v36
    %v38 = vadd.f32 %v37, 0.18741608
    %v39 = vmul.f32 %v30, %v38
    %v40 = vadd.f32 %v39, 1.1283791
    %v41 = vmul.f32 %v27, %v40
    %v42 = vmul.f32 %v30, 3.8918573e-05
    %v43 = vadd.f32 %v42, 0.001143296
    %v44 = vmul.f32 %v30, %v43
    %v45 = vadd.f32 %v44, 0.014752088
    %v46 = vmul.f32 %v30, %v45
    %v47 = vadd.f32 %v46, 0.112945676
    %v48 = vmul.f32 %v30, %v47
    %v49 = vadd.f32 %v48, 0.4994258
    %v50 = vmul.f32 %v30, %v49
    %v51 = vadd.f32 %v50, 1.0
    %v52 = vrcp.pop %v51
    %v53 = vmul.f32 %v51, %v52
    %v54 = vsub.f32 1.0, %v53
    %v55 = vmul.f32 %v52, %v54
    %v56 = vadd.f32 %v52, %v55
    %vm57 = vweird.f32 %v51
    %vm58 = vweird.f32 %v52
    %vm59 = vmor %vm57, %vm58
    %v60 = vsel %vm59, %v52, %v56
    %v61 = vand.u32 2147483647, %v51
    %vm62 = vcmp.eq.f32.partialorder %v61, 8.507059e+37
    %v63 = vand.u32 %v51, 2147483648
    %v64 = vor.u32 1.1754944e-38, %v63
    %v65 = vsel %vm62, %v64, %v60
    %v66 = vmul.f32 %v41, %v65
    %v67 = vmin.f32 %v66, 1.0
    %v68 = vmax.f32 %v67, -1.0
    %v69 = vmul.f32 %v28, %v28
    %v70 = vmin.f32 16.0, %v69
    %v71 = vmul.f32 %v70, 2.1237322e-06
    %v72 = vadd.f32 %v71, 0.00028619796
    %v73 = vmul.f32 %v70, %v72
    %v74 = vadd.f32 %v73, 0.0036580483
    %v75 = vmul.f32 %v70, %v74
    %v76 = vadd.f32 %v75, 0.05243302
    %v77 = vmul.f32 %v70, %v76
    %v78 = vadd.f32 %v77, 0.18741608
    %v79 = vmul.f32 %v70, %v78
    %v80 = vadd.f32 %v79, 1.1283791
    %v81 = vmul.f32 %v28, %v80
    %v82 = vmul.f32 %v70, 3.8918573e-05
    %v83 = vadd.f32 %v82, 0.001143296
    %v84 = vmul.f32 %v70, %v83
    %v85 = vadd.f32 %v84, 0.014752088
    %v86 = vmul.f32 %v70, %v85
    %v87 = vadd.f32 %v86, 0.112945676
    %v88 = vmul.f32 %v70, %v87
    %v89 = vadd.f32 %v88, 0.4994258
    %v90 = vmul.f32 %v70, %v89
    %v91 = vadd.f32 %v90, 1.0
    %v92 = vrcp.pop %v91
    %v93 = vmul.f32 %v91, %v92
    %v94 = vsub.f32 1.0, %v93
    %v95 = vmul.f32 %v92, %v94
    %v96 = vadd.f32 %v92, %v95
    %vm97 = vweird.f32 %v91
    %vm98 = vweird.f32 %v92
    %vm99 = vmor %vm97, %vm98
    %v100 = vsel %vm99, %v92, %v96
    %v101 = vand.u32 2147483647, %v91
    %vm102 = vcmp.eq.f32.partialorder %v101, 8.507059e+37
    %v103 = vand.u32 %v91, 2147483648
    %v104 = vor.u32 1.1754944e-38, %v103
    %v105 = vsel %vm102, %v104, %v100
    %v106 = vmul.f32 %v81, %v105
    %v107 = vmin.f32 %v106, 1.0
    %v108 = vmax.f32 %v107, -1.0
    %v109 = vadd.f32 %v68, 1.0
    %v110 = vadd.f32 %v108, 1.0
    %v111 = vmul.f32 %v25, %v109
    %v112 = vmul.f32 %v26, %v110
    %113 = vst [vmem:[#allocation5] sm:$0xff] %v111
    %114 = vst [vmem:[#allocation5 + $0x8] sm:$0xff] %v112
    // Predicated region
    $region10: #{tpu_custom_call.1} parent=1 // pred_check
      _
    $region11: #{tpu_custom_call.1} parent=1 // pred_check_branch
      %116 = sbr.rel (0) target = $region13
    $region12: #{tpu_custom_call.1} parent=1 // pred_region
      %118 = vsyncadd [#allocation4], 0
      %s120 = sshll.u32 [#allocation5], 4
      %s121 = int_to_ptr.vmem [resolvable:$true] %s120
      %s122 = sshll.u32 %s1, 4
      %s123 = int_to_ptr.hbm [resolvable:$true] %s122
      %125 = dma.vmem_to_hbm [thread:$0]  %s121, 256, %s123, [#allocation4]
    $region13: #{tpu_custom_call.1} parent=1 // pred_fallthru
      _
    // Predicated region
    $region14: #{tpu_custom_call.1} parent=1 // pred_check
      _
    $region15: #{tpu_custom_call.1} parent=1 // pred_check_branch
      %127 = sbr.rel (0) target = $region17
    $region16: #{tpu_custom_call.1} parent=1 // pred_region
      %129 = dma.done [#allocation4], 256
    $region17: #{tpu_custom_call.1} parent=1 // pred_fallthru
      _
    %130 = vsyncpa [#allocation3], 1
    %131 = vsyncpa [#allocation4], 1

</llo_original>
